<compile_context>
chip_gen: v7x
topology: tpu7x:2x2x1
jax: 0.10.0
libtpu: 0.0.40
codegen_flags: <defaults>
</compile_context>

<pallas_src>
from functools import partial

import jax
import jax.numpy as jnp
from jax.experimental import pallas as pl
from jax.experimental.pallas import tpu as pltpu


def _round_up(x, m):
    return (x + m - 1) // m * m


# ----------------------------- fused kernel --------------------------------

def adaptive_emb_kernel(ids_ref, emb_hbm, *rest, tok_block, blocks_per_core,
                        scale, project, compute_dtype):
    if project:
        proj_ref, out_ref, gather_buf, sems = rest
    else:
        out_ref, gather_buf, sems = rest
        proj_ref = None

    core = pl.program_id(0)            # v7x: parallel axis (1 on v5e/v6e)
    j = pl.program_id(1)               # sequential token-block axis (per core)
    blk = core * blocks_per_core + j
    slot = j % 2

    def issue_gather(block_idx, dst_slot):
        """Start one row DMA per token of `block_idx`; all signal sems[dst_slot]."""
        base = block_idx * tok_block

        def issue_row(t):
            row = ids_ref[base + t]                       # SMEM scalar read
            pltpu.make_async_copy(
                emb_hbm.at[pl.ds(row, 1), :],             # (1, d_embed) HBM row
                gather_buf.at[dst_slot, pl.ds(t, 1), :],  # (1, d_embed) VMEM
                sems.at[dst_slot],                        # one sem per slot
            ).start()

        if tok_block <= 32:                               # small: static unroll
            for t in range(tok_block):
                issue_row(t)
        else:                                             # large: compact loop
            @pl.loop(0, tok_block)
            def _(t):
                issue_row(t)

    # Prime the pipeline on the first block of this core's sequence.
    @pl.when(j == 0)
    def _():
        issue_gather(blk, slot)

    # Issue next block's gathers BEFORE waiting on the current block: keeps the
    # DMA engines busy during the wait and keeps the SMEM id reads ahead of it.
    @pl.when(j + 1 < pl.num_programs(1))
    def _():
        issue_gather(blk + 1, 1 - slot)

    # Single aggregate wait: descriptor covers exactly tok_block*d_embed elements
    # of the table dtype, matching the sum of the tok_block row copies.
    pltpu.make_async_copy(
        emb_hbm.at[pl.ds(0, tok_block), :],
        gather_buf.at[slot],
        sems.at[slot],
    ).wait()

    rows = gather_buf[slot]                               # (tok_block, d_embed)
    if project:
        # Weight already transposed / cast / lane-padded in the wrapper.
        out = jnp.dot(rows.astype(compute_dtype), proj_ref[...],
                      preferred_element_type=jnp.float32)
    else:
        out = rows.astype(jnp.float32)
    out_ref[...] = (out * scale).astype(out_ref.dtype)    # lane-dense store


# ----------------------------- wrapper --------------------------------------

def adaptive_embedding_forward(inp, emb_weight, proj_weight=None, *,
                               tok_block=None, num_cores=1,
                               out_dtype=jnp.float32,
                               compute_dtype=jnp.float32):
    """AdaptiveEmbedding.forward (single-cluster path).

    inp:         int token ids, any shape (e.g. (qlen, bsz))
    emb_weight:  (n_token, d_embed)  -- use bf16 in production (halves gather BW)
    proj_weight: (d_proj, d_embed) or None (d_proj == d_embed case)
    tok_block:   rows per grid step; None -> min(256, padded token count).
                 Use 128-256 (v5e), 256-512 (v6e), 256-384/core (v7x).
    num_cores:   set 2 on v7x to split token blocks across both TensorCores.
    returns:     inp.shape + (d_proj,), scaled by sqrt(d_proj)
    """
    n_token, d_embed = emb_weight.shape
    project = proj_weight is not None
    if project:
        d_proj = proj_weight.shape[0]
        d_out_pad = _round_up(d_proj, 128)          # lane-dense output stores
        # F.linear => x @ W.T. Hoist transpose + compute-dtype cast + lane pad
        # out of the kernel: the weight is VMEM-resident across all grid steps,
        # so doing this per step would be pure wasted VPU work.
        proj_t = jnp.transpose(proj_weight).astype(compute_dtype)
        if d_out_pad != d_proj:
            proj_t = jnp.pad(proj_t, ((0, 0), (0, d_out_pad - d_proj)))
    else:
        d_proj = d_embed
        d_out_pad = d_embed
        proj_t = None
        # TODO(synk): pad the no-projection output to a 128 multiple too when
        # d_embed % 128 != 0 (would need padded gather rows).
    emb_scale = float(d_proj) ** 0.5

    ids = inp.reshape(-1).astype(jnp.int32)
    n_tok = int(ids.shape[0])

    if tok_block is None:
        tok_block = min(256, _round_up(n_tok, 8))   # don't gather mostly padding
    tok_block = max(8, _round_up(tok_block, 8))
    assert tok_block <= n_token, (
        "aggregate wait descriptor requires tok_block <= n_token")

    nblk = (n_tok + tok_block - 1) // tok_block
    blocks_per_core = (nblk + num_cores - 1) // num_cores
    nblk_total = num_cores * blocks_per_core
    n_total = nblk_total * tok_block
    if n_total != n_tok:                             # padded tokens gather row 0
        ids = jnp.concatenate([ids, jnp.zeros((n_total - n_tok,), jnp.int32)])

    kernel = partial(adaptive_emb_kernel, tok_block=tok_block,
                     blocks_per_core=blocks_per_core, scale=emb_scale,
                     project=project, compute_dtype=compute_dtype)

    in_specs = [pl.BlockSpec(memory_space=pl.ANY)]   # table stays in HBM
    operands = [emb_weight]
    if project:
        # Whole weight, constant block index -> resident in VMEM across steps.
        in_specs.append(pl.BlockSpec((d_embed, d_out_pad),
                                     lambda c, j, ids_ref: (0, 0)))
        operands.append(proj_t)

    emb_bytes = jnp.dtype(emb_weight.dtype).itemsize
    out_bytes = jnp.dtype(out_dtype).itemsize
    cmp_bytes = jnp.dtype(compute_dtype).itemsize
    vmem_budget = (2 * tok_block * d_embed * emb_bytes          # gather dbl-buf
                   + 2 * tok_block * d_out_pad * out_bytes      # output dbl-buf
                   + (2 * d_embed * d_out_pad * cmp_bytes if project else 0))
    vmem_limit = int(min(max(2 * vmem_budget, 32 << 20), 100 << 20))

    cost = pl.CostEstimate(
        flops=(2 * n_total * d_embed * d_out_pad) if project else n_total * d_embed,
        transcendentals=0,
        bytes_accessed=(n_total * d_embed * emb_bytes
                        + n_total * d_out_pad * out_bytes
                        + (d_embed * d_out_pad * cmp_bytes if project else 0)),
    )

    out = pl.pallas_call(
        kernel,
        grid_spec=pltpu.PrefetchScalarGridSpec(
            num_scalar_prefetch=1,                   # token ids -> SMEM
            grid=(num_cores, blocks_per_core),
            in_specs=in_specs,
            out_specs=pl.BlockSpec(
                (tok_block, d_out_pad),
                lambda c, j, ids_ref: (c * blocks_per_core + j, 0)),
            scratch_shapes=[
                pltpu.VMEM((2, tok_block, d_embed), emb_weight.dtype),  # dbl buf
                pltpu.SemaphoreType.DMA((2,)),       # one sem per slot
            ],
        ),
        out_shape=jax.ShapeDtypeStruct((n_total, d_out_pad), out_dtype),
        compiler_params=pltpu.CompilerParams(
            # core axis may be split across TensorCores (v7x); block axis carries
            # the manual double-buffer DMA state -> sequential.
            dimension_semantics=("parallel", "arbitrary"),
            vmem_limit_bytes=vmem_limit,
        ),
        cost_estimate=cost,
    )(ids, *operands)

    out = out[:n_tok, :d_proj]
    return out.reshape(inp.shape + (d_proj,))


# ----------------------------- pure-JAX reference ---------------------------

def reference_forward(inp, emb_weight, proj_weight=None):
    embed = emb_weight[inp].astype(jnp.float32)
    if proj_weight is not None:
        embed = embed @ proj_weight.T.astype(jnp.float32)
        d_proj = proj_weight.shape[0]
    else:
        d_proj = emb_weight.shape[1]
    return embed * (float(d_proj) ** 0.5)


# ----------------------------------- main -----------------------------------

if __name__ == "__main__":
    # d_proj deliberately NOT a multiple of 128 -> exercises lane padding + slice.
    n_token, d_embed, d_proj = 1024, 128, 192
    qlen, bsz = 8, 2
    tok_block = 8        # tiny block so the 16-token demo runs 2 pipelined steps

    key = jax.random.PRNGKey(0)
    k_emb, k_proj, k_inp = jax.random.split(key, 3)
    emb_weight = jax.random.normal(k_emb, (n_token, d_embed), jnp.float32)
    proj_weight = (jax.random.normal(k_proj, (d_proj, d_embed), jnp.float32)
                   * (1.0 / d_embed ** 0.5))
    inp = jax.random.randint(k_inp, (qlen, bsz), 0, n_token, dtype=jnp.int32)

    def rel_err(a, b):
        return float(jnp.max(jnp.abs(a.astype(jnp.float32) - b))
                     / (jnp.max(jnp.abs(b)) + 1e-6))

    # ---- 1) f32 projection path (gather -> matmul -> scale) ----
    # Structural bugs (row indexing / transpose) give O(1) error; the bound below
    # catches those while staying above any MXU bf16-pass rounding of the f32
    # matmul (Mosaic multi-pass f32 typically lands near ~1e-6).
    fwd = jax.jit(partial(adaptive_embedding_forward, tok_block=tok_block))
    out = jax.block_until_ready(fwd(inp, emb_weight, proj_weight))
    assert out.shape == (qlen, bsz, d_proj)
    ref = reference_forward(inp, emb_weight, proj_weight)
    e = rel_err(out, ref)
    assert e < 1e-2, f"f32 projection path mismatch: rel_err={e}"

    # ---- 2) identity path (d_proj == d_embed, no projection): exact ----
    out_np = jax.block_until_ready(fwd(inp, emb_weight, None))
    assert out_np.shape == (qlen, bsz, d_embed)
    ref_np = reference_forward(inp, emb_weight, None)
    e_np = rel_err(out_np, ref_np)
    assert e_np < 1e-6, f"identity path mismatch: rel_err={e_np}"

    # ---- 3) bf16 table + bf16 MXU compute, tok_block > 32 (pl.loop path,
    #         single padded block) -- the production configuration ----
    emb_bf16 = emb_weight.astype(jnp.bfloat16)
    fwd_bf16 = jax.jit(partial(adaptive_embedding_forward, tok_block=40,
                               compute_dtype=jnp.bfloat16))
    out_bf = jax.block_until_ready(fwd_bf16(inp, emb_bf16, proj_weight))
    assert out_bf.shape == (qlen, bsz, d_proj)
    ref_bf = reference_forward(inp, emb_bf16.astype(jnp.float32), proj_weight)
    e_bf = rel_err(out_bf, ref_bf)
    assert e_bf < 3e-2, f"bf16 projection path mismatch: rel_err={e_bf}"

    print("KERNEL_OK")
</pallas_src>

<mosaic_0001>
module attributes {stable_mosaic.version = 11 : i64} {
  func.func @adaptive_emb_kernel(%arg0: i32, %arg1: i32, %arg2: memref<16xi32, #tpu.memory_space<smem>>, %arg3: memref<1024x128xf32, #tpu.memory_space<any>>, %arg4: memref<128x256xf32, #tpu.memory_space<vmem>>, %arg5: memref<8x256xf32, #tpu.memory_space<vmem>>, %arg6: memref<2x8x128xf32, #tpu.memory_space<vmem>>, %arg7: memref<2x!tpu.dma_semaphore, #tpu.memory_space<semaphore_mem>>) attributes {dimension_semantics = [#tpu.dimension_semantics<parallel>, #tpu.dimension_semantics<arbitrary>], iteration_bounds = array<i64: 1, 2>, scalar_prefetch = 1 : i64, scratch_operands = 2 : i64, tpu.core_type = #tpu.core_type<tc>, window_params = [{}, {pipeline_mode = #tpu.pipeline_mode<synchronous>, transform_indices = @transform_1, window_bounds = array<i64: 128, 256>}, {transform_indices = @transform_2, window_bounds = array<i64: 8, 256>}]} {
    %c2_i32 = arith.constant 2 : i32
    %0 = arith.muli %arg0, %c2_i32 : i32
    %1 = arith.addi %0, %arg1 : i32
    %c2_i32_0 = arith.constant 2 : i32
    %c0_i32 = arith.constant 0 : i32
    %2 = arith.cmpi eq, %c2_i32_0, %c0_i32 : i32
    %c1_i32 = arith.constant 1 : i32
    %3 = arith.select %2, %c1_i32, %c2_i32_0 : i32
    %4 = arith.remsi %arg1, %3 : i32
    %c0_i32_1 = arith.constant 0 : i32
    %5 = arith.cmpi ne, %4, %c0_i32_1 : i32
    %c0_i32_2 = arith.constant 0 : i32
    %6 = arith.cmpi slt, %4, %c0_i32_2 : i32
    %c0_i32_3 = arith.constant 0 : i32
    %7 = arith.cmpi slt, %3, %c0_i32_3 : i32
    %8 = arith.xori %6, %7 : i1
    %9 = arith.andi %8, %5 : i1
    %10 = arith.addi %4, %3 : i32
    %11 = arith.select %9, %10, %4 : i32
    %c0_i32_4 = arith.constant 0 : i32
    %12 = arith.cmpi eq, %arg1, %c0_i32_4 : i32
    %13 = arith.extui %12 : i1 to i32
    %c0_i32_5 = arith.constant 0 : i32
    %14 = arith.cmpi ne, %13, %c0_i32_5 : i32
    scf.if %14 {
      %c8_i32 = arith.constant 8 : i32
      %32 = arith.muli %1, %c8_i32 : i32
      %c0_i32_19 = arith.constant 0 : i32
      %33 = arith.addi %32, %c0_i32_19 : i32
      %34 = arith.index_cast %33 : i32 to index
      %35 = memref.load %arg2[%34] : memref<16xi32, #tpu.memory_space<smem>>
      %c0_i32_20 = arith.constant 0 : i32
      %36 = tpu.memref_slice %arg3[%35, %c0_i32_20] : memref<1024x128xf32, #tpu.memory_space<any>> -> memref<1x128xf32, #tpu.memory_space<any>>
      %c0_i32_21 = arith.constant 0 : i32
      %c0_i32_22 = arith.constant 0 : i32
      %37 = tpu.memref_slice %arg6[%11, %c0_i32_21, %c0_i32_22] : memref<2x8x128xf32, #tpu.memory_space<vmem>> -> memref<1x1x128xf32, #tpu.memory_space<vmem>>
      %38 = tpu.memref_squeeze %37 : memref<1x1x128xf32, #tpu.memory_space<vmem>> -> memref<1x128xf32, #tpu.memory_space<vmem>>
      %39 = tpu.memref_slice %arg7[%11] : memref<2x!tpu.dma_semaphore, #tpu.memory_space<semaphore_mem>> -> memref<1x!tpu.dma_semaphore, #tpu.memory_space<semaphore_mem>>
      %40 = tpu.memref_squeeze %39 : memref<1x!tpu.dma_semaphore, #tpu.memory_space<semaphore_mem>> -> memref<!tpu.dma_semaphore, #tpu.memory_space<semaphore_mem>>
      tpu.enqueue_dma source(%36 : memref<1x128xf32, #tpu.memory_space<any>>) target(%38 : memref<1x128xf32, #tpu.memory_space<vmem>>) target_semaphore(%40 : memref<!tpu.dma_semaphore, #tpu.memory_space<semaphore_mem>>)
      %c1_i32_23 = arith.constant 1 : i32
      %41 = arith.addi %32, %c1_i32_23 : i32
      %42 = arith.index_cast %41 : i32 to index
      %43 = memref.load %arg2[%42] : memref<16xi32, #tpu.memory_space<smem>>
      %c0_i32_24 = arith.constant 0 : i32
      %44 = tpu.memref_slice %arg3[%43, %c0_i32_24] : memref<1024x128xf32, #tpu.memory_space<any>> -> memref<1x128xf32, #tpu.memory_space<any>>
      %c1_i32_25 = arith.constant 1 : i32
      %c0_i32_26 = arith.constant 0 : i32
      %45 = tpu.memref_slice %arg6[%11, %c1_i32_25, %c0_i32_26] : memref<2x8x128xf32, #tpu.memory_space<vmem>> -> memref<1x1x128xf32, #tpu.memory_space<vmem>>
      %46 = tpu.memref_squeeze %45 : memref<1x1x128xf32, #tpu.memory_space<vmem>> -> memref<1x128xf32, #tpu.memory_space<vmem>>
      %47 = tpu.memref_slice %arg7[%11] : memref<2x!tpu.dma_semaphore, #tpu.memory_space<semaphore_mem>> -> memref<1x!tpu.dma_semaphore, #tpu.memory_space<semaphore_mem>>
      %48 = tpu.memref_squeeze %47 : memref<1x!tpu.dma_semaphore, #tpu.memory_space<semaphore_mem>> -> memref<!tpu.dma_semaphore, #tpu.memory_space<semaphore_mem>>
      tpu.enqueue_dma source(%44 : memref<1x128xf32, #tpu.memory_space<any>>) target(%46 : memref<1x128xf32, #tpu.memory_space<vmem>>) target_semaphore(%48 : memref<!tpu.dma_semaphore, #tpu.memory_space<semaphore_mem>>)
      %c2_i32_27 = arith.constant 2 : i32
      %49 = arith.addi %32, %c2_i32_27 : i32
      %50 = arith.index_cast %49 : i32 to index
      %51 = memref.load %arg2[%50] : memref<16xi32, #tpu.memory_space<smem>>
      %c0_i32_28 = arith.constant 0 : i32
      %52 = tpu.memref_slice %arg3[%51, %c0_i32_28] : memref<1024x128xf32, #tpu.memory_space<any>> -> memref<1x128xf32, #tpu.memory_space<any>>
      %c2_i32_29 = arith.constant 2 : i32
      %c0_i32_30 = arith.constant 0 : i32
      %53 = tpu.memref_slice %arg6[%11, %c2_i32_29, %c0_i32_30] : memref<2x8x128xf32, #tpu.memory_space<vmem>> -> memref<1x1x128xf32, #tpu.memory_space<vmem>>
      %54 = tpu.memref_squeeze %53 : memref<1x1x128xf32, #tpu.memory_space<vmem>> -> memref<1x128xf32, #tpu.memory_space<vmem>>
      %55 = tpu.memref_slice %arg7[%11] : memref<2x!tpu.dma_semaphore, #tpu.memory_space<semaphore_mem>> -> memref<1x!tpu.dma_semaphore, #tpu.memory_space<semaphore_mem>>
      %56 = tpu.memref_squeeze %55 : memref<1x!tpu.dma_semaphore, #tpu.memory_space<semaphore_mem>> -> memref<!tpu.dma_semaphore, #tpu.memory_space<semaphore_mem>>
      tpu.enqueue_dma source(%52 : memref<1x128xf32, #tpu.memory_space<any>>) target(%54 : memref<1x128xf32, #tpu.memory_space<vmem>>) target_semaphore(%56 : memref<!tpu.dma_semaphore, #tpu.memory_space<semaphore_mem>>)
      %c3_i32 = arith.constant 3 : i32
      %57 = arith.addi %32, %c3_i32 : i32
      %58 = arith.index_cast %57 : i32 to index
      %59 = memref.load %arg2[%58] : memref<16xi32, #tpu.memory_space<smem>>
      %c0_i32_31 = arith.constant 0 : i32
      %60 = tpu.memref_slice %arg3[%59, %c0_i32_31] : memref<1024x128xf32, #tpu.memory_space<any>> -> memref<1x128xf32, #tpu.memory_space<any>>
      %c3_i32_32 = arith.constant 3 : i32
      %c0_i32_33 = arith.constant 0 : i32
      %61 = tpu.memref_slice %arg6[%11, %c3_i32_32, %c0_i32_33] : memref<2x8x128xf32, #tpu.memory_space<vmem>> -> memref<1x1x128xf32, #tpu.memory_space<vmem>>
      %62 = tpu.memref_squeeze %61 : memref<1x1x128xf32, #tpu.memory_space<vmem>> -> memref<1x128xf32, #tpu.memory_space<vmem>>
      %63 = tpu.memref_slice %arg7[%11] : memref<2x!tpu.dma_semaphore, #tpu.memory_space<semaphore_mem>> -> memref<1x!tpu.dma_semaphore, #tpu.memory_space<semaphore_mem>>
      %64 = tpu.memref_squeeze %63 : memref<1x!tpu.dma_semaphore, #tpu.memory_space<semaphore_mem>> -> memref<!tpu.dma_semaphore, #tpu.memory_space<semaphore_mem>>
      tpu.enqueue_dma source(%60 : memref<1x128xf32, #tpu.memory_space<any>>) target(%62 : memref<1x128xf32, #tpu.memory_space<vmem>>) target_semaphore(%64 : memref<!tpu.dma_semaphore, #tpu.memory_space<semaphore_mem>>)
      %c4_i32 = arith.constant 4 : i32
      %65 = arith.addi %32, %c4_i32 : i32
      %66 = arith.index_cast %65 : i32 to index
      %67 = memref.load %arg2[%66] : memref<16xi32, #tpu.memory_space<smem>>
      %c0_i32_34 = arith.constant 0 : i32
      %68 = tpu.memref_slice %arg3[%67, %c0_i32_34] : memref<1024x128xf32, #tpu.memory_space<any>> -> memref<1x128xf32, #tpu.memory_space<any>>
      %c4_i32_35 = arith.constant 4 : i32
      %c0_i32_36 = arith.constant 0 : i32
      %69 = tpu.memref_slice %arg6[%11, %c4_i32_35, %c0_i32_36] : memref<2x8x128xf32, #tpu.memory_space<vmem>> -> memref<1x1x128xf32, #tpu.memory_space<vmem>>
      %70 = tpu.memref_squeeze %69 : memref<1x1x128xf32, #tpu.memory_space<vmem>> -> memref<1x128xf32, #tpu.memory_space<vmem>>
      %71 = tpu.memref_slice %arg7[%11] : memref<2x!tpu.dma_semaphore, #tpu.memory_space<semaphore_mem>> -> memref<1x!tpu.dma_semaphore, #tpu.memory_space<semaphore_mem>>
      %72 = tpu.memref_squeeze %71 : memref<1x!tpu.dma_semaphore, #tpu.memory_space<semaphore_mem>> -> memref<!tpu.dma_semaphore, #tpu.memory_space<semaphore_mem>>
      tpu.enqueue_dma source(%68 : memref<1x128xf32, #tpu.memory_space<any>>) target(%70 : memref<1x128xf32, #tpu.memory_space<vmem>>) target_semaphore(%72 : memref<!tpu.dma_semaphore, #tpu.memory_space<semaphore_mem>>)
      %c5_i32 = arith.constant 5 : i32
      %73 = arith.addi %32, %c5_i32 : i32
      %74 = arith.index_cast %73 : i32 to index
      %75 = memref.load %arg2[%74] : memref<16xi32, #tpu.memory_space<smem>>
      %c0_i32_37 = arith.constant 0 : i32
      %76 = tpu.memref_slice %arg3[%75, %c0_i32_37] : memref<1024x128xf32, #tpu.memory_space<any>> -> memref<1x128xf32, #tpu.memory_space<any>>
      %c5_i32_38 = arith.constant 5 : i32
      %c0_i32_39 = arith.constant 0 : i32
      %77 = tpu.memref_slice %arg6[%11, %c5_i32_38, %c0_i32_39] : memref<2x8x128xf32, #tpu.memory_space<vmem>> -> memref<1x1x128xf32, #tpu.memory_space<vmem>>
      %78 = tpu.memref_squeeze %77 : memref<1x1x128xf32, #tpu.memory_space<vmem>> -> memref<1x128xf32, #tpu.memory_space<vmem>>
      %79 = tpu.memref_slice %arg7[%11] : memref<2x!tpu.dma_semaphore, #tpu.memory_space<semaphore_mem>> -> memref<1x!tpu.dma_semaphore, #tpu.memory_space<semaphore_mem>>
      %80 = tpu.memref_squeeze %79 : memref<1x!tpu.dma_semaphore, #tpu.memory_space<semaphore_mem>> -> memref<!tpu.dma_semaphore, #tpu.memory_space<semaphore_mem>>
      tpu.enqueue_dma source(%76 : memref<1x128xf32, #tpu.memory_space<any>>) target(%78 : memref<1x128xf32, #tpu.memory_space<vmem>>) target_semaphore(%80 : memref<!tpu.dma_semaphore, #tpu.memory_space<semaphore_mem>>)
      %c6_i32 = arith.constant 6 : i32
      %81 = arith.addi %32, %c6_i32 : i32
      %82 = arith.index_cast %81 : i32 to index
      %83 = memref.load %arg2[%82] : memref<16xi32, #tpu.memory_space<smem>>
      %c0_i32_40 = arith.constant 0 : i32
      %84 = tpu.memref_slice %arg3[%83, %c0_i32_40] : memref<1024x128xf32, #tpu.memory_space<any>> -> memref<1x128xf32, #tpu.memory_space<any>>
      %c6_i32_41 = arith.constant 6 : i32
      %c0_i32_42 = arith.constant 0 : i32
      %85 = tpu.memref_slice %arg6[%11, %c6_i32_41, %c0_i32_42] : memref<2x8x128xf32, #tpu.memory_space<vmem>> -> memref<1x1x128xf32, #tpu.memory_space<vmem>>
      %86 = tpu.memref_squeeze %85 : memref<1x1x128xf32, #tpu.memory_space<vmem>> -> memref<1x128xf32, #tpu.memory_space<vmem>>
      %87 = tpu.memref_slice %arg7[%11] : memref<2x!tpu.dma_semaphore, #tpu.memory_space<semaphore_mem>> -> memref<1x!tpu.dma_semaphore, #tpu.memory_space<semaphore_mem>>
      %88 = tpu.memref_squeeze %87 : memref<1x!tpu.dma_semaphore, #tpu.memory_space<semaphore_mem>> -> memref<!tpu.dma_semaphore, #tpu.memory_space<semaphore_mem>>
      tpu.enqueue_dma source(%84 : memref<1x128xf32, #tpu.memory_space<any>>) target(%86 : memref<1x128xf32, #tpu.memory_space<vmem>>) target_semaphore(%88 : memref<!tpu.dma_semaphore, #tpu.memory_space<semaphore_mem>>)
      %c7_i32 = arith.constant 7 : i32
      %89 = arith.addi %32, %c7_i32 : i32
      %90 = arith.index_cast %89 : i32 to index
      %91 = memref.load %arg2[%90] : memref<16xi32, #tpu.memory_space<smem>>
      %c0_i32_43 = arith.constant 0 : i32
      %92 = tpu.memref_slice %arg3[%91, %c0_i32_43] : memref<1024x128xf32, #tpu.memory_space<any>> -> memref<1x128xf32, #tpu.memory_space<any>>
      %c7_i32_44 = arith.constant 7 : i32
      %c0_i32_45 = arith.constant 0 : i32
      %93 = tpu.memref_slice %arg6[%11, %c7_i32_44, %c0_i32_45] : memref<2x8x128xf32, #tpu.memory_space<vmem>> -> memref<1x1x128xf32, #tpu.memory_space<vmem>>
      %94 = tpu.memref_squeeze %93 : memref<1x1x128xf32, #tpu.memory_space<vmem>> -> memref<1x128xf32, #tpu.memory_space<vmem>>
      %95 = tpu.memref_slice %arg7[%11] : memref<2x!tpu.dma_semaphore, #tpu.memory_space<semaphore_mem>> -> memref<1x!tpu.dma_semaphore, #tpu.memory_space<semaphore_mem>>
      %96 = tpu.memref_squeeze %95 : memref<1x!tpu.dma_semaphore, #tpu.memory_space<semaphore_mem>> -> memref<!tpu.dma_semaphore, #tpu.memory_space<semaphore_mem>>
      tpu.enqueue_dma source(%92 : memref<1x128xf32, #tpu.memory_space<any>>) target(%94 : memref<1x128xf32, #tpu.memory_space<vmem>>) target_semaphore(%96 : memref<!tpu.dma_semaphore, #tpu.memory_space<semaphore_mem>>)
    } else {
    }
    %c1_i32_6 = arith.constant 1 : i32
    %15 = arith.addi %arg1, %c1_i32_6 : i32
    %c2_i32_7 = arith.constant 2 : i32
    %16 = arith.cmpi slt, %15, %c2_i32_7 : i32
    %17 = arith.extui %16 : i1 to i32
    %c0_i32_8 = arith.constant 0 : i32
    %18 = arith.cmpi ne, %17, %c0_i32_8 : i32
    scf.if %18 {
      %c1_i32_19 = arith.constant 1 : i32
      %32 = arith.addi %1, %c1_i32_19 : i32
      %c1_i32_20 = arith.constant 1 : i32
      %33 = arith.subi %c1_i32_20, %11 : i32
      %c8_i32 = arith.constant 8 : i32
      %34 = arith.muli %32, %c8_i32 : i32
      %c0_i32_21 = arith.constant 0 : i32
      %35 = arith.addi %34, %c0_i32_21 : i32
      %36 = arith.index_cast %35 : i32 to index
      %37 = memref.load %arg2[%36] : memref<16xi32, #tpu.memory_space<smem>>
      %c0_i32_22 = arith.constant 0 : i32
      %38 = tpu.memref_slice %arg3[%37, %c0_i32_22] : memref<1024x128xf32, #tpu.memory_space<any>> -> memref<1x128xf32, #tpu.memory_space<any>>
      %c0_i32_23 = arith.constant 0 : i32
      %c0_i32_24 = arith.constant 0 : i32
      %39 = tpu.memref_slice %arg6[%33, %c0_i32_23, %c0_i32_24] : memref<2x8x128xf32, #tpu.memory_space<vmem>> -> memref<1x1x128xf32, #tpu.memory_space<vmem>>
      %40 = tpu.memref_squeeze %39 : memref<1x1x128xf32, #tpu.memory_space<vmem>> -> memref<1x128xf32, #tpu.memory_space<vmem>>
      %41 = tpu.memref_slice %arg7[%33] : memref<2x!tpu.dma_semaphore, #tpu.memory_space<semaphore_mem>> -> memref<1x!tpu.dma_semaphore, #tpu.memory_space<semaphore_mem>>
      %42 = tpu.memref_squeeze %41 : memref<1x!tpu.dma_semaphore, #tpu.memory_space<semaphore_mem>> -> memref<!tpu.dma_semaphore, #tpu.memory_space<semaphore_mem>>
      tpu.enqueue_dma source(%38 : memref<1x128xf32, #tpu.memory_space<any>>) target(%40 : memref<1x128xf32, #tpu.memory_space<vmem>>) target_semaphore(%42 : memref<!tpu.dma_semaphore, #tpu.memory_space<semaphore_mem>>)
      %c1_i32_25 = arith.constant 1 : i32
      %43 = arith.addi %34, %c1_i32_25 : i32
      %44 = arith.index_cast %43 : i32 to index
      %45 = memref.load %arg2[%44] : memref<16xi32, #tpu.memory_space<smem>>
      %c0_i32_26 = arith.constant 0 : i32
      %46 = tpu.memref_slice %arg3[%45, %c0_i32_26] : memref<1024x128xf32, #tpu.memory_space<any>> -> memref<1x128xf32, #tpu.memory_space<any>>
      %c1_i32_27 = arith.constant 1 : i32
      %c0_i32_28 = arith.constant 0 : i32
      %47 = tpu.memref_slice %arg6[%33, %c1_i32_27, %c0_i32_28] : memref<2x8x128xf32, #tpu.memory_space<vmem>> -> memref<1x1x128xf32, #tpu.memory_space<vmem>>
      %48 = tpu.memref_squeeze %47 : memref<1x1x128xf32, #tpu.memory_space<vmem>> -> memref<1x128xf32, #tpu.memory_space<vmem>>
      %49 = tpu.memref_slice %arg7[%33] : memref<2x!tpu.dma_semaphore, #tpu.memory_space<semaphore_mem>> -> memref<1x!tpu.dma_semaphore, #tpu.memory_space<semaphore_mem>>
      %50 = tpu.memref_squeeze %49 : memref<1x!tpu.dma_semaphore, #tpu.memory_space<semaphore_mem>> -> memref<!tpu.dma_semaphore, #tpu.memory_space<semaphore_mem>>
      tpu.enqueue_dma source(%46 : memref<1x128xf32, #tpu.memory_space<any>>) target(%48 : memref<1x128xf32, #tpu.memory_space<vmem>>) target_semaphore(%50 : memref<!tpu.dma_semaphore, #tpu.memory_space<semaphore_mem>>)
      %c2_i32_29 = arith.constant 2 : i32
      %51 = arith.addi %34, %c2_i32_29 : i32
      %52 = arith.index_cast %51 : i32 to index
      %53 = memref.load %arg2[%52] : memref<16xi32, #tpu.memory_space<smem>>
      %c0_i32_30 = arith.constant 0 : i32
      %54 = tpu.memref_slice %arg3[%53, %c0_i32_30] : memref<1024x128xf32, #tpu.memory_space<any>> -> memref<1x128xf32, #tpu.memory_space<any>>
      %c2_i32_31 = arith.constant 2 : i32
      %c0_i32_32 = arith.constant 0 : i32
      %55 = tpu.memref_slice %arg6[%33, %c2_i32_31, %c0_i32_32] : memref<2x8x128xf32, #tpu.memory_space<vmem>> -> memref<1x1x128xf32, #tpu.memory_space<vmem>>
      %56 = tpu.memref_squeeze %55 : memref<1x1x128xf32, #tpu.memory_space<vmem>> -> memref<1x128xf32, #tpu.memory_space<vmem>>
      %57 = tpu.memref_slice %arg7[%33] : memref<2x!tpu.dma_semaphore, #tpu.memory_space<semaphore_mem>> -> memref<1x!tpu.dma_semaphore, #tpu.memory_space<semaphore_mem>>
      %58 = tpu.memref_squeeze %57 : memref<1x!tpu.dma_semaphore, #tpu.memory_space<semaphore_mem>> -> memref<!tpu.dma_semaphore, #tpu.memory_space<semaphore_mem>>
      tpu.enqueue_dma source(%54 : memref<1x128xf32, #tpu.memory_space<any>>) target(%56 : memref<1x128xf32, #tpu.memory_space<vmem>>) target_semaphore(%58 : memref<!tpu.dma_semaphore, #tpu.memory_space<semaphore_mem>>)
      %c3_i32 = arith.constant 3 : i32
      %59 = arith.addi %34, %c3_i32 : i32
      %60 = arith.index_cast %59 : i32 to index
      %61 = memref.load %arg2[%60] : memref<16xi32, #tpu.memory_space<smem>>
      %c0_i32_33 = arith.constant 0 : i32
      %62 = tpu.memref_slice %arg3[%61, %c0_i32_33] : memref<1024x128xf32, #tpu.memory_space<any>> -> memref<1x128xf32, #tpu.memory_space<any>>
      %c3_i32_34 = arith.constant 3 : i32
      %c0_i32_35 = arith.constant 0 : i32
      %63 = tpu.memref_slice %arg6[%33, %c3_i32_34, %c0_i32_35] : memref<2x8x128xf32, #tpu.memory_space<vmem>> -> memref<1x1x128xf32, #tpu.memory_space<vmem>>
      %64 = tpu.memref_squeeze %63 : memref<1x1x128xf32, #tpu.memory_space<vmem>> -> memref<1x128xf32, #tpu.memory_space<vmem>>
      %65 = tpu.memref_slice %arg7[%33] : memref<2x!tpu.dma_semaphore, #tpu.memory_space<semaphore_mem>> -> memref<1x!tpu.dma_semaphore, #tpu.memory_space<semaphore_mem>>
      %66 = tpu.memref_squeeze %65 : memref<1x!tpu.dma_semaphore, #tpu.memory_space<semaphore_mem>> -> memref<!tpu.dma_semaphore, #tpu.memory_space<semaphore_mem>>
      tpu.enqueue_dma source(%62 : memref<1x128xf32, #tpu.memory_space<any>>) target(%64 : memref<1x128xf32, #tpu.memory_space<vmem>>) target_semaphore(%66 : memref<!tpu.dma_semaphore, #tpu.memory_space<semaphore_mem>>)
      %c4_i32 = arith.constant 4 : i32
      %67 = arith.addi %34, %c4_i32 : i32
      %68 = arith.index_cast %67 : i32 to index
      %69 = memref.load %arg2[%68] : memref<16xi32, #tpu.memory_space<smem>>
      %c0_i32_36 = arith.constant 0 : i32
      %70 = tpu.memref_slice %arg3[%69, %c0_i32_36] : memref<1024x128xf32, #tpu.memory_space<any>> -> memref<1x128xf32, #tpu.memory_space<any>>
      %c4_i32_37 = arith.constant 4 : i32
      %c0_i32_38 = arith.constant 0 : i32
      %71 = tpu.memref_slice %arg6[%33, %c4_i32_37, %c0_i32_38] : memref<2x8x128xf32, #tpu.memory_space<vmem>> -> memref<1x1x128xf32, #tpu.memory_space<vmem>>
      %72 = tpu.memref_squeeze %71 : memref<1x1x128xf32, #tpu.memory_space<vmem>> -> memref<1x128xf32, #tpu.memory_space<vmem>>
      %73 = tpu.memref_slice %arg7[%33] : memref<2x!tpu.dma_semaphore, #tpu.memory_space<semaphore_mem>> -> memref<1x!tpu.dma_semaphore, #tpu.memory_space<semaphore_mem>>
      %74 = tpu.memref_squeeze %73 : memref<1x!tpu.dma_semaphore, #tpu.memory_space<semaphore_mem>> -> memref<!tpu.dma_semaphore, #tpu.memory_space<semaphore_mem>>
      tpu.enqueue_dma source(%70 : memref<1x128xf32, #tpu.memory_space<any>>) target(%72 : memref<1x128xf32, #tpu.memory_space<vmem>>) target_semaphore(%74 : memref<!tpu.dma_semaphore, #tpu.memory_space<semaphore_mem>>)
      %c5_i32 = arith.constant 5 : i32
      %75 = arith.addi %34, %c5_i32 : i32
      %76 = arith.index_cast %75 : i32 to index
      %77 = memref.load %arg2[%76] : memref<16xi32, #tpu.memory_space<smem>>
      %c0_i32_39 = arith.constant 0 : i32
      %78 = tpu.memref_slice %arg3[%77, %c0_i32_39] : memref<1024x128xf32, #tpu.memory_space<any>> -> memref<1x128xf32, #tpu.memory_space<any>>
      %c5_i32_40 = arith.constant 5 : i32
      %c0_i32_41 = arith.constant 0 : i32
      %79 = tpu.memref_slice %arg6[%33, %c5_i32_40, %c0_i32_41] : memref<2x8x128xf32, #tpu.memory_space<vmem>> -> memref<1x1x128xf32, #tpu.memory_space<vmem>>
      %80 = tpu.memref_squeeze %79 : memref<1x1x128xf32, #tpu.memory_space<vmem>> -> memref<1x128xf32, #tpu.memory_space<vmem>>
      %81 = tpu.memref_slice %arg7[%33] : memref<2x!tpu.dma_semaphore, #tpu.memory_space<semaphore_mem>> -> memref<1x!tpu.dma_semaphore, #tpu.memory_space<semaphore_mem>>
      %82 = tpu.memref_squeeze %81 : memref<1x!tpu.dma_semaphore, #tpu.memory_space<semaphore_mem>> -> memref<!tpu.dma_semaphore, #tpu.memory_space<semaphore_mem>>
      tpu.enqueue_dma source(%78 : memref<1x128xf32, #tpu.memory_space<any>>) target(%80 : memref<1x128xf32, #tpu.memory_space<vmem>>) target_semaphore(%82 : memref<!tpu.dma_semaphore, #tpu.memory_space<semaphore_mem>>)
      %c6_i32 = arith.constant 6 : i32
      %83 = arith.addi %34, %c6_i32 : i32
      %84 = arith.index_cast %83 : i32 to index
      %85 = memref.load %arg2[%84] : memref<16xi32, #tpu.memory_space<smem>>
      %c0_i32_42 = arith.constant 0 : i32
      %86 = tpu.memref_slice %arg3[%85, %c0_i32_42] : memref<1024x128xf32, #tpu.memory_space<any>> -> memref<1x128xf32, #tpu.memory_space<any>>
      %c6_i32_43 = arith.constant 6 : i32
      %c0_i32_44 = arith.constant 0 : i32
      %87 = tpu.memref_slice %arg6[%33, %c6_i32_43, %c0_i32_44] : memref<2x8x128xf32, #tpu.memory_space<vmem>> -> memref<1x1x128xf32, #tpu.memory_space<vmem>>
      %88 = tpu.memref_squeeze %87 : memref<1x1x128xf32, #tpu.memory_space<vmem>> -> memref<1x128xf32, #tpu.memory_space<vmem>>
      %89 = tpu.memref_slice %arg7[%33] : memref<2x!tpu.dma_semaphore, #tpu.memory_space<semaphore_mem>> -> memref<1x!tpu.dma_semaphore, #tpu.memory_space<semaphore_mem>>
      %90 = tpu.memref_squeeze %89 : memref<1x!tpu.dma_semaphore, #tpu.memory_space<semaphore_mem>> -> memref<!tpu.dma_semaphore, #tpu.memory_space<semaphore_mem>>
      tpu.enqueue_dma source(%86 : memref<1x128xf32, #tpu.memory_space<any>>) target(%88 : memref<1x128xf32, #tpu.memory_space<vmem>>) target_semaphore(%90 : memref<!tpu.dma_semaphore, #tpu.memory_space<semaphore_mem>>)
      %c7_i32 = arith.constant 7 : i32
      %91 = arith.addi %34, %c7_i32 : i32
      %92 = arith.index_cast %91 : i32 to index
      %93 = memref.load %arg2[%92] : memref<16xi32, #tpu.memory_space<smem>>
      %c0_i32_45 = arith.constant 0 : i32
      %94 = tpu.memref_slice %arg3[%93, %c0_i32_45] : memref<1024x128xf32, #tpu.memory_space<any>> -> memref<1x128xf32, #tpu.memory_space<any>>
      %c7_i32_46 = arith.constant 7 : i32
      %c0_i32_47 = arith.constant 0 : i32
      %95 = tpu.memref_slice %arg6[%33, %c7_i32_46, %c0_i32_47] : memref<2x8x128xf32, #tpu.memory_space<vmem>> -> memref<1x1x128xf32, #tpu.memory_space<vmem>>
      %96 = tpu.memref_squeeze %95 : memref<1x1x128xf32, #tpu.memory_space<vmem>> -> memref<1x128xf32, #tpu.memory_space<vmem>>
      %97 = tpu.memref_slice %arg7[%33] : memref<2x!tpu.dma_semaphore, #tpu.memory_space<semaphore_mem>> -> memref<1x!tpu.dma_semaphore, #tpu.memory_space<semaphore_mem>>
      %98 = tpu.memref_squeeze %97 : memref<1x!tpu.dma_semaphore, #tpu.memory_space<semaphore_mem>> -> memref<!tpu.dma_semaphore, #tpu.memory_space<semaphore_mem>>
      tpu.enqueue_dma source(%94 : memref<1x128xf32, #tpu.memory_space<any>>) target(%96 : memref<1x128xf32, #tpu.memory_space<vmem>>) target_semaphore(%98 : memref<!tpu.dma_semaphore, #tpu.memory_space<semaphore_mem>>)
    } else {
    }
    %c0_i32_9 = arith.constant 0 : i32
    %c0_i32_10 = arith.constant 0 : i32
    %19 = tpu.memref_slice %arg3[%c0_i32_9, %c0_i32_10] : memref<1024x128xf32, #tpu.memory_space<any>> -> memref<8x128xf32, #tpu.memory_space<any>>
    %c0_i32_11 = arith.constant 0 : i32
    %c0_i32_12 = arith.constant 0 : i32
    %20 = tpu.memref_slice %arg6[%11, %c0_i32_11, %c0_i32_12] : memref<2x8x128xf32, #tpu.memory_space<vmem>> -> memref<1x8x128xf32, #tpu.memory_space<vmem>>
    %21 = tpu.memref_squeeze %20 : memref<1x8x128xf32, #tpu.memory_space<vmem>> -> memref<8x128xf32, #tpu.memory_space<vmem>>
    %22 = tpu.memref_slice %arg7[%11] : memref<2x!tpu.dma_semaphore, #tpu.memory_space<semaphore_mem>> -> memref<1x!tpu.dma_semaphore, #tpu.memory_space<semaphore_mem>>
    %23 = tpu.memref_squeeze %22 : memref<1x!tpu.dma_semaphore, #tpu.memory_space<semaphore_mem>> -> memref<!tpu.dma_semaphore, #tpu.memory_space<semaphore_mem>>
    tpu.wait_dma2 semaphore(%23 : memref<!tpu.dma_semaphore, #tpu.memory_space<semaphore_mem>>) src(%19 : memref<8x128xf32, #tpu.memory_space<any>>) dst(%21 : memref<8x128xf32, #tpu.memory_space<vmem>>)
    %24 = arith.index_cast %11 : i32 to index
    %c0 = arith.constant 0 : index
    %c0_13 = arith.constant 0 : index
    %25 = vector.load %arg6[%24, %c0, %c0_13] : memref<2x8x128xf32, #tpu.memory_space<vmem>>, vector<1x8x128xf32>
    %26 = vector.shape_cast %25 : vector<1x8x128xf32> to vector<8x128xf32>
    %c0_14 = arith.constant 0 : index
    %c0_15 = arith.constant 0 : index
    %27 = vector.load %arg4[%c0_14, %c0_15] : memref<128x256xf32, #tpu.memory_space<vmem>>, vector<128x256xf32>
    %cst = arith.constant dense<0.000000e+00> : vector<8x256xf32>
    %28 = tpu.matmul %26, %27, %cst {dimension_numbers = #tpu.dot_dimension_numbers<[1], [0], [0], [1], [0, 0, 1, 1], [], []>} : vector<8x128xf32>, vector<128x256xf32>, vector<8x256xf32> -> vector<8x256xf32>
    %cst_16 = arith.constant 13.8564062 : f32
    %29 = vector.broadcast %cst_16 : f32 to vector<8x256xf32>
    %30 = arith.mulf %28, %29 : vector<8x256xf32>
    %c0_17 = arith.constant 0 : index
    %c0_18 = arith.constant 0 : index
    %31 = vector.load %arg5[%c0_17, %c0_18] : memref<8x256xf32, #tpu.memory_space<vmem>>, vector<8x256xf32>
    tpu.vector_store %arg5[%c0_17, %c0_18], %30 {strides = array<i32>} : memref<8x256xf32, #tpu.memory_space<vmem>>, vector<8x256xf32>,
    return
  }
  func.func @transform_1(%arg0: i32, %arg1: i32, %arg2: memref<16xi32, #tpu.memory_space<smem>>) -> (i32, i32) {
    %c0_i32 = arith.constant 0 : i32
    %c0_i32_0 = arith.constant 0 : i32
    %c0_i32_1 = arith.constant 0 : i32
    return %c0_i32, %c0_i32_0 : i32, i32
  }
  func.func @transform_2(%arg0: i32, %arg1: i32, %arg2: memref<16xi32, #tpu.memory_space<smem>>) -> (i32, i32) {
    %c2_i32 = arith.constant 2 : i32
    %0 = arith.muli %arg0, %c2_i32 : i32
    %1 = arith.addi %0, %arg1 : i32
    %c0_i32 = arith.constant 0 : i32
    %c0_i32_0 = arith.constant 0 : i32
    return %1, %c0_i32 : i32, i32
  }
}

</mosaic_0001>

<llo_original>
// kernel: adaptive_embedding_forward.1
$region0: #{adaptive_embedding_forward.1}
  #allocation0 [shape = 'u32[]', space=smem, size = 0x4, offset = 0x4, fixed_abs, tag = 'smem constant byte address 0x4 - core index']
  #allocation1 [shape = 'u32[144,128]{1,0:T(1,128)}', space=vmem, size = 0x12000, scoped, tag = 'internal scratch']
  #allocation2 [shape = 'f32[2,8,128]{2,1,0:T(8,128)}', space=vmem, size = 0x2000, scoped, tag = 'scratch operand']
  #allocation3 [shape = 's32[2]{0}', space=sflag, size = 0x8, scoped, tag = 'scratch operand']
  #allocation4 [shape = 's32[1]{0}', space=sflag, size = 0x4, scoped, tag = 'scoped memory for adaptive_embedding_forward.1']
  #allocation5 [shape = 'u8[512]{0}', space=smem, size = 0x200, scoped, tag = 'prefetched SMEM operand 0']
  #allocation6 [shape = 's32[]', space=sflag, size = 0x4, offset = 0, fixed_abs, tag = 'sflag constant byte address 0x0 - dummy sync flag']
  #allocation7 [shape = 's32[]', space=sflag, size = 0x4, offset = 0, fixed_abs, tag = 'sflag constant byte address 0x0 - dummy sync flag']
  #allocation8 [shape = 'u32[]', space=smem, size = 0x4, offset = 0x44, fixed_abs, tag = 'smem constant byte address 0x44 - assertion arg 0']
  #allocation9 [shape = 'u32[]', space=smem, size = 0x4, offset = 0x48, fixed_abs, tag = 'smem constant byte address 0x48 - assertion arg 1']
  #allocation10 [shape = 's32[]', space=sflag, size = 0x4, offset = 0, fixed_abs, tag = 'sflag constant byte address 0x0 - dummy sync flag']
  #allocation11 [shape = 's32[]', space=sflag, size = 0x4, offset = 0, fixed_abs, tag = 'sflag constant byte address 0x0 - dummy sync flag']
  #allocation12 [shape = 's32[]', space=sflag, size = 0x4, offset = 0, fixed_abs, tag = 'sflag constant byte address 0x0 - dummy sync flag']
  #allocation13 [shape = 's32[]', space=sflag, size = 0x4, offset = 0, fixed_abs, tag = 'sflag constant byte address 0x0 - dummy sync flag']
  #allocation14 [shape = 's32[]', space=sflag, size = 0x4, offset = 0, fixed_abs, tag = 'sflag constant byte address 0x0 - dummy sync flag']
  #allocation15 [shape = 's32[]', space=sflag, size = 0x4, offset = 0, fixed_abs, tag = 'sflag constant byte address 0x0 - dummy sync flag']
  #allocation16 [shape = 's32[]', space=sflag, size = 0x4, offset = 0, fixed_abs, tag = 'sflag constant byte address 0x0 - dummy sync flag']
  #allocation17 [shape = 's32[]', space=sflag, size = 0x4, offset = 0, fixed_abs, tag = 'sflag constant byte address 0x0 - dummy sync flag']
  #allocation18 [shape = 's32[]', space=sflag, size = 0x4, offset = 0, fixed_abs, tag = 'sflag constant byte address 0x0 - dummy sync flag']
  #allocation19 [shape = 's32[]', space=sflag, size = 0x4, offset = 0, fixed_abs, tag = 'sflag constant byte address 0x0 - dummy sync flag']
  #allocation20 [shape = 's32[]', space=sflag, size = 0x4, offset = 0, fixed_abs, tag = 'sflag constant byte address 0x0 - dummy sync flag']
  #allocation21 [shape = 's32[]', space=sflag, size = 0x4, offset = 0, fixed_abs, tag = 'sflag constant byte address 0x0 - dummy sync flag']
  #allocation22 [shape = 's32[]', space=sflag, size = 0x4, offset = 0, fixed_abs, tag = 'sflag constant byte address 0x0 - dummy sync flag']
  #allocation23 [shape = 's32[]', space=sflag, size = 0x4, offset = 0, fixed_abs, tag = 'sflag constant byte address 0x0 - dummy sync flag']
  #allocation24 [shape = 's32[]', space=sflag, size = 0x4, offset = 0, fixed_abs, tag = 'sflag constant byte address 0x0 - dummy sync flag']
  #allocation25 [shape = 's32[]', space=sflag, size = 0x4, offset = 0, fixed_abs, tag = 'sflag constant byte address 0x0 - dummy sync flag']
  #allocation26 [shape = 's32[]', space=sflag, size = 0x4, offset = 0, fixed_abs, tag = 'sflag constant byte address 0x0 - dummy sync flag']
  #allocation27 [shape = 's32[]', space=sflag, size = 0x4, offset = 0, fixed_abs, tag = 'sflag constant byte address 0x0 - dummy sync flag']
  #allocation28 [shape = 's32[]', space=sflag, size = 0x4, offset = 0, fixed_abs, tag = 'sflag constant byte address 0x0 - dummy sync flag']
  #allocation29 [shape = 's32[]', space=sflag, size = 0x4, offset = 0, fixed_abs, tag = 'sflag constant byte address 0x0 - dummy sync flag']
  #allocation30 [shape = 's32[]', space=sflag, size = 0x4, offset = 0, fixed_abs, tag = 'sflag constant byte address 0x0 - dummy sync flag']
  #allocation31 [shape = 's32[]', space=sflag, size = 0x4, offset = 0, fixed_abs, tag = 'sflag constant byte address 0x0 - dummy sync flag']
  #allocation32 [shape = 's32[]', space=sflag, size = 0x4, offset = 0, fixed_abs, tag = 'sflag constant byte address 0x0 - dummy sync flag']
  #allocation33 [shape = 's32[]', space=sflag, size = 0x4, offset = 0, fixed_abs, tag = 'sflag constant byte address 0x0 - dummy sync flag']
  #allocation34 [shape = 's32[]', space=sflag, size = 0x4, offset = 0, fixed_abs, tag = 'sflag constant byte address 0x0 - dummy sync flag']
  #allocation35 [shape = 's32[]', space=sflag, size = 0x4, offset = 0, fixed_abs, tag = 'sflag constant byte address 0x0 - dummy sync flag']
  #allocation36 [shape = 's32[]', space=sflag, size = 0x4, offset = 0, fixed_abs, tag = 'sflag constant byte address 0x0 - dummy sync flag']
  #allocation37 [shape = 's32[]', space=sflag, size = 0x4, offset = 0, fixed_abs, tag = 'sflag constant byte address 0x0 - dummy sync flag']
  #allocation38 [shape = 's32[]', space=sflag, size = 0x4, offset = 0, fixed_abs, tag = 'sflag constant byte address 0x0 - dummy sync flag']
  #allocation39 [shape = 's32[]', space=sflag, size = 0x4, offset = 0, fixed_abs, tag = 'sflag constant byte address 0x0 - dummy sync flag']
  %s0 = inlined_call_operand.vmem [shape: s32[16], index: 0, kind: input, shape index: {}]
  %s1 = inlined_call_operand.hbm [shape: f32[1024,128], index: 1, kind: input, shape index: {}]
  %s2 = inlined_call_operand.vmem [shape: f32[128,256], index: 2, kind: input, shape index: {}]
  %s3 = inlined_call_operand.vmem [shape: f32[16,256], index: 3, kind: output, shape index: {}]
  %s4 = sld [smem:[#allocation0]]
  $region109: #{adaptive_embedding_forward.1} parent=0
    _
  %s6 = ssub.s32 1, %s4
  %s7 = scalar_select 0, %s6, %s4
  %s8 = sshll.u32 %s0, 4
  %s9 = int_to_ptr.vmem [resolvable:$true] %s8
  %11 = dma.vmem_to_smem %s9, 16, [#allocation5], [#allocation4]
  %12 = dma.done [#allocation4], 16
  %13 = sfence
  loop: start=0, step=1, limit=4
  $region2: #{adaptive_embedding_forward.1} parent=0 // loop_pre_header
    _
  $region3: #{adaptive_embedding_forward.1} parent=0 // loop_header
    %s15 = sphi 0, %s19
    %p16 = scmp.ge.s32.totalorder %s15, 4
    %s22 = sphi 0, %s34
    %s23 = sphi 0, %s30
    %s24 = sphi 0, %s22
    %s25 = sphi 0, %s23
    %s26 = sphi 0, %s24
    %s27 = sphi 0, %s25
    %s35 = sphi 0, %s35
    %s37 = sphi 0, %s35
    %s38 = sphi 0, %s37
    %s52 = sphi 0, %s38
    %s62 = sphi 0, %s64
    %s65 = sphi 0, %s62
    %s66 = sphi 0, %s65
    %s82 = sphi 0, %s66
  $region4: #{adaptive_embedding_forward.1} parent=0 // loop_header_branch
    %18 = sbr.rel (%p16) target = $region8
  $region5: #{adaptive_embedding_forward.1} parent=0 // loop_body
    %s20 = ssub.s32 %s15, 1
    %s21 = ssub.s32 %s15, 2
    %s28 = sadd.s32 1, %s23
    %p29 = scmp.ge.s32.totalorder %s28, 2
    %s30 = scalar_select %p29, 0, %s28
    %s31 = sadd.s32 1, %s22
    %s32 = scalar_select %p29, %s31, %s22
    %p33 = scmp.ge.s32.totalorder %s32, 1
    %s34 = scalar_select %p33, 0, %s32
    %s36 = sadd.s32 %s35, 1
    %p39 = scmp.eq.s32.totalorder %s15, 1
    %p40 = scmp.ne.s32.totalorder %s35, %s37
    %p41 = scmp.eq.s32.totalorder %s15, 0
    %p42 = por %p40, %p41
    %p43 = scmp.ne.s32.totalorder %s35, %s37
    %p44 = scmp.eq.s32.totalorder %s20, 1
    %p45 = por %p43, %p44
    %p46 = scmp.ne.s32.totalorder %s37, %s38
    %p47 = scmp.eq.s32.totalorder %s20, 0
    %p48 = por %p46, %p47
    %p49 = scmp.ne.s32.totalorder %s37, %s38
    %p50 = scmp.eq.s32.totalorder %s21, 1
    %p51 = por %p49, %p50
    %p53 = scmp.ne.s32.totalorder %s38, %s52
    %p54 = scmp.eq.s32.totalorder %s21, 0
    %p55 = por %p53, %p54
    %s56 = smul.u32 %s22, 2
    %s57 = sadd.s32 %s56, %s23
    %s58 = smul.u32 %s34, 2
    %s59 = sadd.s32 %s58, %s30
    %s60 = ssub.s32 %s57, %s59
    %p61 = scmp.eq.s32.totalorder %s60, 0
    %s63 = sadd.s32 %s62, 1
    %s64 = scalar_select %p61, %s62, %s63
    %p67 = pneg %p61
    %p68 = scmp.eq.s32.totalorder %s15, 1
    %p69 = por %p67, %p68
    %p70 = scmp.ne.s32.totalorder %s62, %s65
    %p71 = scmp.eq.s32.totalorder %s15, 0
    %p72 = por %p70, %p71
    %p73 = scmp.ne.s32.totalorder %s62, %s65
    %p74 = scmp.eq.s32.totalorder %s20, 1
    %p75 = por %p73, %p74
    %p76 = scmp.ne.s32.totalorder %s65, %s66
    %p77 = scmp.eq.s32.totalorder %s20, 0
    %p78 = por %p76, %p77
    %p79 = scmp.ne.s32.totalorder %s65, %s66
    %p80 = scmp.eq.s32.totalorder %s21, 1
    %p81 = por %p79, %p80
    %p83 = scmp.ne.s32.totalorder %s66, %s82
    %p84 = scmp.eq.s32.totalorder %s21, 0
    %p85 = por %p83, %p84
    %p86 = scmp.le.s32.totalorder 1, %s15
    %p87 = scmp.lt.s32.totalorder %s15, 3
    %p88 = pnand %p86, %p87
    %p89 = pneg %p88
    // Predicated region
    $region9: #{adaptive_embedding_forward.1} parent=5 // pred_check
      _
    $region10: #{adaptive_embedding_forward.1} parent=5 // pred_check_branch
      %91 = sbr.rel (%p88) target = $region12
    $region11: #{adaptive_embedding_forward.1} parent=5 // pred_region
      %s92 = ssub.s32 %s15, 1
      // Predicated region
      $region13: #{adaptive_embedding_forward.1} parent=11 // pred_check
        %p93 = pneg %p48
      $region14: #{adaptive_embedding_forward.1} parent=11 // pred_check_branch
        %95 = sbr.rel (%p93) target = $region16
      $region15: #{adaptive_embedding_forward.1} parent=11 // pred_region
        _
      $region16: #{adaptive_embedding_forward.1} parent=11 // pred_fallthru
        _
    $region12: #{adaptive_embedding_forward.1} parent=5 // pred_fallthru
      _
    %p96 = scmp.lt.s32.totalorder %s15, 2
    // Predicated region
    $region17: #{adaptive_embedding_forward.1} parent=5 // pred_check
      %p97 = pneg %p96
    $region18: #{adaptive_embedding_forward.1} parent=5 // pred_check_branch
      %99 = sbr.rel (%p97) target = $region20
    $region19: #{adaptive_embedding_forward.1} parent=5 // pred_region
      _
    $region20: #{adaptive_embedding_forward.1} parent=5 // pred_fallthru
      _
    %p100 = scmp.le.s32.totalorder 1, %s15
    %p101 = scmp.lt.s32.totalorder %s15, 3
    %p102 = pnand %p100, %p101
    %p103 = pneg %p102
    // Predicated region
    $region21: #{adaptive_embedding_forward.1} parent=5 // pred_check
      _
    $region22: #{adaptive_embedding_forward.1} parent=5 // pred_check_branch
      %105 = sbr.rel (%p102) target = $region24
    $region23: #{adaptive_embedding_forward.1} parent=5 // pred_region
      %s106 = ssub.s32 %s15, 1
      %p107 = pneg %p48
      %p108 = pneg %p45
      %p109 = pneg %p78
      %p110 = pneg %p75
      %s111 = smul.u32 %s24, 2
      %s112 = sadd.s32 %s111, %s25
      %p113 = scmp.lt.s32.totalorder %s112, 1
      %s114 = scalar_select %p113, %s112, 1
      %s115 = smul.addr %s114, 2
      %s116 = smul.addr %s115, 8
      %s117 = scalar_lea.vmem %s3, %s116
      %s118 = smul.u32 %s24, 2
      %s119 = sadd.s32 %s118, %s25
      %p120 = scmp.lt.s32.totalorder %s119, 1
      %s121 = scalar_select %p120, %s119, 1
      %s122 = smul.addr %s121, 2
      %s123 = smul.addr %s122, 8
      %s124 = scalar_lea.vmem %s3, %s123
      %s125 = smul.u32 %s24, 2
      %s126 = sadd.s32 %s125, %s25
      %s127 = smul.u32 %s24, 2
      %s128 = sadd.s32 %s127, %s25
      %p129 = scmp.lt.s32.totalorder %s25, 0
      %s130 = ssub.s32 0, %s25
      %s131 = scalar_select %p129, %s130, %s25
      %s132 = sand.u32 %s131, 1
      %s133 = ssub.s32 0, %s132
      %s134 = scalar_select %p129, %s133, %s132
      %p135 = scmp.ne.s32.totalorder %s134, 0
      %p136 = scmp.lt.s32.totalorder %s134, 0
      %p137 = pnand %p136, %p135
      %p138 = pneg %p137
      %s139 = sadd.s32 %s134, 2
      %s140 = scalar_select %p138, %s139, %s134
      %p141 = scmp.eq.s32.totalorder %s25, 0
      // Predicated region
      $region25: #{adaptive_embedding_forward.1} parent=23 // pred_check
        %p142 = pneg %p141
      $region26: #{adaptive_embedding_forward.1} parent=23 // pred_check_branch
        %144 = sbr.rel (%p142) target = $region28
      $region27: #{adaptive_embedding_forward.1} parent=23 // pred_region
        %s145 = smul.u32 %s128, 8
        %s146 = sld [smem:[#allocation5 + %s145]]
        %s147 = smul.addr %s146, 16
        %s148 = scalar_lea.hbm %s1, %s147
        %s149 = smul.u32 %s140, 8
        %s150 = scalar_lea.vmem [#allocation2], %s149
        %s151 = scalar_lea.sflag [#allocation3], %s140
        // Predicated region
        $region29: #{adaptive_embedding_forward.1} parent=27 // pred_check
          _
        $region30: #{adaptive_embedding_forward.1} parent=27 // pred_check_branch
          %153 = sbr.rel target = $region32
        $region31: #{adaptive_embedding_forward.1} parent=27 // pred_region
          %154 = sst [smem:[#allocation8]] [#allocation7]
          %155 = sst [smem:[#allocation9]] [#allocation6]
        $region32: #{adaptive_embedding_forward.1} parent=27 // pred_fallthru
          _
        %157 = shalt.err (0)
        %s159 = sshll.u32 %s150, 4
        %s160 = int_to_ptr.vmem [resolvable:$true] %s159
        %162 = dma.hbm_to_vmem [thread:$0]  %s148, 16, %s160, %s151
        %s163 = sadd.s32 %s145, 1
        %s164 = sld [smem:[#allocation5 + %s163]]
        %s165 = smul.addr %s164, 16
        %s166 = scalar_lea.hbm %s1, %s165
        %s167 = sadd.s32 1, %s149
        %s168 = scalar_lea.vmem [#allocation2], %s167
        // Predicated region
        $region33: #{adaptive_embedding_forward.1} parent=27 // pred_check
          _
        $region34: #{adaptive_embedding_forward.1} parent=27 // pred_check_branch
          %170 = sbr.rel target = $region36
        $region35: #{adaptive_embedding_forward.1} parent=27 // pred_region
          %171 = sst [smem:[#allocation8]] [#allocation11]
          %172 = sst [smem:[#allocation9]] [#allocation10]
        $region36: #{adaptive_embedding_forward.1} parent=27 // pred_fallthru
          _
        %174 = shalt.err (0)
        %s176 = sshll.u32 %s168, 4
        %s177 = int_to_ptr.vmem [resolvable:$true] %s176
        %179 = dma.hbm_to_vmem [thread:$0]  %s166, 16, %s177, %s151
        %s180 = sadd.s32 %s145, 2
        %s181 = sld [smem:[#allocation5 + %s180]]
        %s182 = smul.addr %s181, 16
        %s183 = scalar_lea.hbm %s1, %s182
        %s184 = sadd.s32 2, %s149
        %s185 = scalar_lea.vmem [#allocation2], %s184
        // Predicated region
        $region37: #{adaptive_embedding_forward.1} parent=27 // pred_check
          _
        $region38: #{adaptive_embedding_forward.1} parent=27 // pred_check_branch
          %187 = sbr.rel target = $region40
        $region39: #{adaptive_embedding_forward.1} parent=27 // pred_region
          %188 = sst [smem:[#allocation8]] [#allocation13]
          %189 = sst [smem:[#allocation9]] [#allocation12]
        $region40: #{adaptive_embedding_forward.1} parent=27 // pred_fallthru
          _
        %191 = shalt.err (0)
        %s193 = sshll.u32 %s185, 4
        %s194 = int_to_ptr.vmem [resolvable:$true] %s193
        %196 = dma.hbm_to_vmem [thread:$0]  %s183, 16, %s194, %s151
        %s197 = sadd.s32 %s145, 3
        %s198 = sld [smem:[#allocation5 + %s197]]
        %s199 = smul.addr %s198, 16
        %s200 = scalar_lea.hbm %s1, %s199
        %s201 = sadd.s32 3, %s149
        %s202 = scalar_lea.vmem [#allocation2], %s201
        // Predicated region
        $region41: #{adaptive_embedding_forward.1} parent=27 // pred_check
          _
        $region42: #{adaptive_embedding_forward.1} parent=27 // pred_check_branch
          %204 = sbr.rel target = $region44
        $region43: #{adaptive_embedding_forward.1} parent=27 // pred_region
          %205 = sst [smem:[#allocation8]] [#allocation15]
          %206 = sst [smem:[#allocation9]] [#allocation14]
        $region44: #{adaptive_embedding_forward.1} parent=27 // pred_fallthru
          _
        %208 = shalt.err (0)
        %s210 = sshll.u32 %s202, 4
        %s211 = int_to_ptr.vmem [resolvable:$true] %s210
        %213 = dma.hbm_to_vmem [thread:$0]  %s200, 16, %s211, %s151
        %s214 = sadd.s32 %s145, 4
        %s215 = sld [smem:[#allocation5 + %s214]]
        %s216 = smul.addr %s215, 16
        %s217 = scalar_lea.hbm %s1, %s216
        %s218 = sadd.s32 4, %s149
        %s219 = scalar_lea.vmem [#allocation2], %s218
        // Predicated region
        $region45: #{adaptive_embedding_forward.1} parent=27 // pred_check
          _
        $region46: #{adaptive_embedding_forward.1} parent=27 // pred_check_branch
          %221 = sbr.rel target = $region48
        $region47: #{adaptive_embedding_forward.1} parent=27 // pred_region
          %222 = sst [smem:[#allocation8]] [#allocation17]
          %223 = sst [smem:[#allocation9]] [#allocation16]
        $region48: #{adaptive_embedding_forward.1} parent=27 // pred_fallthru
          _
        %225 = shalt.err (0)
        %s227 = sshll.u32 %s219, 4
        %s228 = int_to_ptr.vmem [resolvable:$true] %s227
        %230 = dma.hbm_to_vmem [thread:$0]  %s217, 16, %s228, %s151
        %s231 = sadd.s32 %s145, 5
        %s232 = sld [smem:[#allocation5 + %s231]]
        %s233 = smul.addr %s232, 16
        %s234 = scalar_lea.hbm %s1, %s233
        %s235 = sadd.s32 5, %s149
        %s236 = scalar_lea.vmem [#allocation2], %s235
        // Predicated region
        $region49: #{adaptive_embedding_forward.1} parent=27 // pred_check
          _
        $region50: #{adaptive_embedding_forward.1} parent=27 // pred_check_branch
          %238 = sbr.rel target = $region52
        $region51: #{adaptive_embedding_forward.1} parent=27 // pred_region
          %239 = sst [smem:[#allocation8]] [#allocation19]
          %240 = sst [smem:[#allocation9]] [#allocation18]
        $region52: #{adaptive_embedding_forward.1} parent=27 // pred_fallthru
          _
        %242 = shalt.err (0)
        %s244 = sshll.u32 %s236, 4
        %s245 = int_to_ptr.vmem [resolvable:$true] %s244
        %247 = dma.hbm_to_vmem [thread:$0]  %s234, 16, %s245, %s151
        %s248 = sadd.s32 %s145, 6
        %s249 = sld [smem:[#allocation5 + %s248]]
        %s250 = smul.addr %s249, 16
        %s251 = scalar_lea.hbm %s1, %s250
        %s252 = sadd.s32 6, %s149
        %s253 = scalar_lea.vmem [#allocation2], %s252
        // Predicated region
        $region53: #{adaptive_embedding_forward.1} parent=27 // pred_check
          _
        $region54: #{adaptive_embedding_forward.1} parent=27 // pred_check_branch
          %255 = sbr.rel target = $region56
        $region55: #{adaptive_embedding_forward.1} parent=27 // pred_region
          %256 = sst [smem:[#allocation8]] [#allocation21]
          %257 = sst [smem:[#allocation9]] [#allocation20]
        $region56: #{adaptive_embedding_forward.1} parent=27 // pred_fallthru
          _
        %259 = shalt.err (0)
        %s261 = sshll.u32 %s253, 4
        %s262 = int_to_ptr.vmem [resolvable:$true] %s261
        %264 = dma.hbm_to_vmem [thread:$0]  %s251, 16, %s262, %s151
        %s265 = sadd.s32 %s145, 7
        %s266 = sld [smem:[#allocation5 + %s265]]
        %s267 = smul.addr %s266, 16
        %s268 = scalar_lea.hbm %s1, %s267
        %s269 = sadd.s32 7, %s149
        %s270 = scalar_lea.vmem [#allocation2], %s269
        // Predicated region
        $region57: #{adaptive_embedding_forward.1} parent=27 // pred_check
          _
        $region58: #{adaptive_embedding_forward.1} parent=27 // pred_check_branch
          %272 = sbr.rel target = $region60
        $region59: #{adaptive_embedding_forward.1} parent=27 // pred_region
          %273 = sst [smem:[#allocation8]] [#allocation23]
          %274 = sst [smem:[#allocation9]] [#allocation22]
        $region60: #{adaptive_embedding_forward.1} parent=27 // pred_fallthru
          _
        %276 = shalt.err (0)
        %s278 = sshll.u32 %s270, 4
        %s279 = int_to_ptr.vmem [resolvable:$true] %s278
        %281 = dma.hbm_to_vmem [thread:$0]  %s268, 16, %s279, %s151
      $region28: #{adaptive_embedding_forward.1} parent=23 // pred_fallthru
        _
      %s282 = sadd.s32 %s25, 1
      %p283 = scmp.lt.s32.totalorder %s282, 2
      // Predicated region
      $region61: #{adaptive_embedding_forward.1} parent=23 // pred_check
        %p284 = pneg %p283
      $region62: #{adaptive_embedding_forward.1} parent=23 // pred_check_branch
        %286 = sbr.rel (%p284) target = $region64
      $region63: #{adaptive_embedding_forward.1} parent=23 // pred_region
        %s287 = sadd.s32 %s128, 1
        %s288 = ssub.s32 1, %s140
        %s289 = smul.u32 %s287, 8
        %s290 = sld [smem:[#allocation5 + %s289]]
        %s291 = smul.addr %s290, 16
        %s292 = scalar_lea.hbm %s1, %s291
        %s293 = smul.u32 %s288, 8
        %s294 = scalar_lea.vmem [#allocation2], %s293
        %s295 = scalar_lea.sflag [#allocation3], %s288
        // Predicated region
        $region65: #{adaptive_embedding_forward.1} parent=63 // pred_check
          _
        $region66: #{adaptive_embedding_forward.1} parent=63 // pred_check_branch
          %297 = sbr.rel target = $region68
        $region67: #{adaptive_embedding_forward.1} parent=63 // pred_region
          %298 = sst [smem:[#allocation8]] [#allocation25]
          %299 = sst [smem:[#allocation9]] [#allocation24]
        $region68: #{adaptive_embedding_forward.1} parent=63 // pred_fallthru
          _
        %301 = shalt.err (0)
        %s303 = sshll.u32 %s294, 4
        %s304 = int_to_ptr.vmem [resolvable:$true] %s303
        %306 = dma.hbm_to_vmem [thread:$0]  %s292, 16, %s304, %s295
        %s307 = sadd.s32 %s289, 1
        %s308 = sld [smem:[#allocation5 + %s307]]
        %s309 = smul.addr %s308, 16
        %s310 = scalar_lea.hbm %s1, %s309
        %s311 = sadd.s32 1, %s293
        %s312 = scalar_lea.vmem [#allocation2], %s311
        // Predicated region
        $region69: #{adaptive_embedding_forward.1} parent=63 // pred_check
          _
        $region70: #{adaptive_embedding_forward.1} parent=63 // pred_check_branch
          %314 = sbr.rel target = $region72
        $region71: #{adaptive_embedding_forward.1} parent=63 // pred_region
          %315 = sst [smem:[#allocation8]] [#allocation27]
          %316 = sst [smem:[#allocation9]] [#allocation26]
        $region72: #{adaptive_embedding_forward.1} parent=63 // pred_fallthru
          _
        %318 = shalt.err (0)
        %s320 = sshll.u32 %s312, 4
        %s321 = int_to_ptr.vmem [resolvable:$true] %s320
        %323 = dma.hbm_to_vmem [thread:$0]  %s310, 16, %s321, %s295
        %s324 = sadd.s32 %s289, 2
        %s325 = sld [smem:[#allocation5 + %s324]]
        %s326 = smul.addr %s325, 16
        %s327 = scalar_lea.hbm %s1, %s326
        %s328 = sadd.s32 2, %s293
        %s329 = scalar_lea.vmem [#allocation2], %s328
        // Predicated region
        $region73: #{adaptive_embedding_forward.1} parent=63 // pred_check
          _
        $region74: #{adaptive_embedding_forward.1} parent=63 // pred_check_branch
          %331 = sbr.rel target = $region76
        $region75: #{adaptive_embedding_forward.1} parent=63 // pred_region
          %332 = sst [smem:[#allocation8]] [#allocation29]
          %333 = sst [smem:[#allocation9]] [#allocation28]
        $region76: #{adaptive_embedding_forward.1} parent=63 // pred_fallthru
          _
        %335 = shalt.err (0)
        %s337 = sshll.u32 %s329, 4
        %s338 = int_to_ptr.vmem [resolvable:$true] %s337
        %340 = dma.hbm_to_vmem [thread:$0]  %s327, 16, %s338, %s295
        %s341 = sadd.s32 %s289, 3
        %s342 = sld [smem:[#allocation5 + %s341]]
        %s343 = smul.addr %s342, 16
        %s344 = scalar_lea.hbm %s1, %s343
        %s345 = sadd.s32 3, %s293
        %s346 = scalar_lea.vmem [#allocation2], %s345
        // Predicated region
        $region77: #{adaptive_embedding_forward.1} parent=63 // pred_check
          _
        $region78: #{adaptive_embedding_forward.1} parent=63 // pred_check_branch
          %348 = sbr.rel target = $region80
        $region79: #{adaptive_embedding_forward.1} parent=63 // pred_region
          %349 = sst [smem:[#allocation8]] [#allocation31]
          %350 = sst [smem:[#allocation9]] [#allocation30]
        $region80: #{adaptive_embedding_forward.1} parent=63 // pred_fallthru
          _
        %352 = shalt.err (0)
        %s354 = sshll.u32 %s346, 4
        %s355 = int_to_ptr.vmem [resolvable:$true] %s354
        %357 = dma.hbm_to_vmem [thread:$0]  %s344, 16, %s355, %s295
        %s358 = sadd.s32 %s289, 4
        %s359 = sld [smem:[#allocation5 + %s358]]
        %s360 = smul.addr %s359, 16
        %s361 = scalar_lea.hbm %s1, %s360
        %s362 = sadd.s32 4, %s293
        %s363 = scalar_lea.vmem [#allocation2], %s362
        // Predicated region
        $region81: #{adaptive_embedding_forward.1} parent=63 // pred_check
          _
        $region82: #{adaptive_embedding_forward.1} parent=63 // pred_check_branch
          %365 = sbr.rel target = $region84
        $region83: #{adaptive_embedding_forward.1} parent=63 // pred_region
          %366 = sst [smem:[#allocation8]] [#allocation33]
          %367 = sst [smem:[#allocation9]] [#allocation32]
        $region84: #{adaptive_embedding_forward.1} parent=63 // pred_fallthru
          _
        %369 = shalt.err (0)
        %s371 = sshll.u32 %s363, 4
        %s372 = int_to_ptr.vmem [resolvable:$true] %s371
        %374 = dma.hbm_to_vmem [thread:$0]  %s361, 16, %s372, %s295
        %s375 = sadd.s32 %s289, 5
        %s376 = sld [smem:[#allocation5 + %s375]]
        %s377 = smul.addr %s376, 16
        %s378 = scalar_lea.hbm %s1, %s377
        %s379 = sadd.s32 5, %s293
        %s380 = scalar_lea.vmem [#allocation2], %s379
        // Predicated region
        $region85: #{adaptive_embedding_forward.1} parent=63 // pred_check
          _
        $region86: #{adaptive_embedding_forward.1} parent=63 // pred_check_branch
          %382 = sbr.rel target = $region88
        $region87: #{adaptive_embedding_forward.1} parent=63 // pred_region
          %383 = sst [smem:[#allocation8]] [#allocation35]
          %384 = sst [smem:[#allocation9]] [#allocation34]
        $region88: #{adaptive_embedding_forward.1} parent=63 // pred_fallthru
          _
        %386 = shalt.err (0)
        %s388 = sshll.u32 %s380, 4
        %s389 = int_to_ptr.vmem [resolvable:$true] %s388
        %391 = dma.hbm_to_vmem [thread:$0]  %s378, 16, %s389, %s295
        %s392 = sadd.s32 %s289, 6
        %s393 = sld [smem:[#allocation5 + %s392]]
        %s394 = smul.addr %s393, 16
        %s395 = scalar_lea.hbm %s1, %s394
        %s396 = sadd.s32 6, %s293
        %s397 = scalar_lea.vmem [#allocation2], %s396
        // Predicated region
        $region89: #{adaptive_embedding_forward.1} parent=63 // pred_check
          _
        $region90: #{adaptive_embedding_forward.1} parent=63 // pred_check_branch
          %399 = sbr.rel target = $region92
        $region91: #{adaptive_embedding_forward.1} parent=63 // pred_region
          %400 = sst [smem:[#allocation8]] [#allocation37]
          %401 = sst [smem:[#allocation9]] [#allocation36]
        $region92: #{adaptive_embedding_forward.1} parent=63 // pred_fallthru
          _
        %403 = shalt.err (0)
        %s405 = sshll.u32 %s397, 4
        %s406 = int_to_ptr.vmem [resolvable:$true] %s405
        %408 = dma.hbm_to_vmem [thread:$0]  %s395, 16, %s406, %s295
        %s409 = sadd.s32 %s289, 7
        %s410 = sld [smem:[#allocation5 + %s409]]
        %s411 = smul.addr %s410, 16
        %s412 = scalar_lea.hbm %s1, %s411
        %s413 = sadd.s32 7, %s293
        %s414 = scalar_lea.vmem [#allocation2], %s413
        // Predicated region
        $region93: #{adaptive_embedding_forward.1} parent=63 // pred_check
          _
        $region94: #{adaptive_embedding_forward.1} parent=63 // pred_check_branch
          %416 = sbr.rel target = $region96
        $region95: #{adaptive_embedding_forward.1} parent=63 // pred_region
          %417 = sst [smem:[#allocation8]] [#allocation39]
          %418 = sst [smem:[#allocation9]] [#allocation38]
        $region96: #{adaptive_embedding_forward.1} parent=63 // pred_fallthru
          _
        %420 = shalt.err (0)
        %s422 = sshll.u32 %s414, 4
        %s423 = int_to_ptr.vmem [resolvable:$true] %s422
        %425 = dma.hbm_to_vmem [thread:$0]  %s412, 16, %s423, %s295
      $region64: #{adaptive_embedding_forward.1} parent=23 // pred_fallthru
        _
      %s426 = smul.u32 %s140, 8
      %s427 = scalar_lea.vmem [#allocation2], %s426
      %s428 = scalar_lea.sflag [#allocation3], %s140
      %s429 = smul.u32 8, 1
      %s430 = sshll.u32 %s429, 4
      %431 = dma.done %s428, %s430
      %v432 = vld [vmem:[%s427] sm:$0xff]
      %v433 = vld [vmem:[%s2] sm:$0xff]
      %v434 = vld [vmem:[%s2 + $0x8] sm:$0xff]
      %v435 = vld [vmem:[%s2 + $0x10] sm:$0xff]
      %v436 = vld [vmem:[%s2 + $0x18] sm:$0xff]
      %v437 = vld [vmem:[%s2 + $0x20] sm:$0xff]
      %v438 = vld [vmem:[%s2 + $0x28] sm:$0xff]
      %v439 = vld [vmem:[%s2 + $0x30] sm:$0xff]
      %v440 = vld [vmem:[%s2 + $0x38] sm:$0xff]
      %v441 = vld [vmem:[%s2 + $0x40] sm:$0xff]
      %v442 = vld [vmem:[%s2 + $0x48] sm:$0xff]
      %v443 = vld [vmem:[%s2 + $0x50] sm:$0xff]
      %v444 = vld [vmem:[%s2 + $0x58] sm:$0xff]
      %v445 = vld [vmem:[%s2 + $0x60] sm:$0xff]
      %v446 = vld [vmem:[%s2 + $0x68] sm:$0xff]
      %v447 = vld [vmem:[%s2 + $0x70] sm:$0xff]
      %v448 = vld [vmem:[%s2 + $0x78] sm:$0xff]
      %v449 = vld [vmem:[%s2 + $0x80] sm:$0xff]
      %v450 = vld [vmem:[%s2 + $0x88] sm:$0xff]
      %v451 = vld [vmem:[%s2 + $0x90] sm:$0xff]
      %v452 = vld [vmem:[%s2 + $0x98] sm:$0xff]
      %v453 = vld [vmem:[%s2 + $0xa0] sm:$0xff]
      %v454 = vld [vmem:[%s2 + $0xa8] sm:$0xff]
      %v455 = vld [vmem:[%s2 + $0xb0] sm:$0xff]
      %v456 = vld [vmem:[%s2 + $0xb8] sm:$0xff]
      %v457 = vld [vmem:[%s2 + $0xc0] sm:$0xff]
      %v458 = vld [vmem:[%s2 + $0xc8] sm:$0xff]
      %v459 = vld [vmem:[%s2 + $0xd0] sm:$0xff]
      %v460 = vld [vmem:[%s2 + $0xd8] sm:$0xff]
      %v461 = vld [vmem:[%s2 + $0xe0] sm:$0xff]
      %v462 = vld [vmem:[%s2 + $0xe8] sm:$0xff]
      %v463 = vld [vmem:[%s2 + $0xf0] sm:$0xff]
      %v464 = vld [vmem:[%s2 + $0xf8] sm:$0xff]
      %465 = vmatprep.subr.mxu0 %v434
      %466 = vmatpush1.msra.mxu0 %v433
      %467 = vmatprep.subr.mxu0 %v436
      %468 = vmatpush1.msra.mxu0 %v435
      %469 = vmatprep.subr.mxu0 %v438
      %470 = vmatpush1.msra.mxu0 %v437
      %471 = vmatprep.subr.mxu0 %v440
      %472 = vmatpush1.msra.mxu0 %v439
      %473 = vmatprep.subr.mxu0 %v442
      %474 = vmatpush1.msra.mxu0 %v441
      %475 = vmatprep.subr.mxu0 %v444
      %476 = vmatpush1.msra.mxu0 %v443
      %477 = vmatprep.subr.mxu0 %v446
      %478 = vmatpush1.msra.mxu0 %v445
      %479 = vmatprep.subr.mxu0 %v448
      %480 = vmatpush1.msra.mxu0 %v447
      %481 = vmatprep.subr.mxu0 %v450
      %482 = vmatpush1.msra.mxu0 %v449
      %483 = vmatprep.subr.mxu0 %v452
      %484 = vmatpush1.msra.mxu0 %v451
      %485 = vmatprep.subr.mxu0 %v454
      %486 = vmatpush1.msra.mxu0 %v453
      %487 = vmatprep.subr.mxu0 %v456
      %488 = vmatpush1.msra.mxu0 %v455
      %489 = vmatprep.subr.mxu0 %v458
      %490 = vmatpush1.msra.mxu0 %v457
      %491 = vmatprep.subr.mxu0 %v460
      %492 = vmatpush1.msra.mxu0 %v459
      %493 = vmatprep.subr.mxu0 %v462
      %494 = vmatpush1.msra.mxu0 %v461
      %495 = vmatprep.subr.mxu0 %v464
      %496 = vmatpush1.msra.mxu0 %v463
      %497 = vmatprep.subr.mxu0 0.0
      %498 = vmatpush1.msra.mxu0 0.0
      %499 = vmatprep.subr.mxu0 0.0
      %500 = vmatpush1.msra.mxu0 0.0
      %501 = vmatprep.subr.mxu0 0.0
      %502 = vmatpush1.msra.mxu0 0.0
      %503 = vmatprep.subr.mxu0 0.0
      %504 = vmatpush1.msra.mxu0 0.0
      %505 = vmatprep.subr.mxu0 0.0
      %506 = vmatpush1.msra.mxu0 0.0
      %507 = vmatprep.subr.mxu0 0.0
      %508 = vmatpush1.msra.mxu0 0.0
      %509 = vmatprep.subr.mxu0 0.0
      %510 = vmatpush1.msra.mxu0 0.0
      %511 = vmatprep.subr.mxu0 0.0
      %512 = vmatpush1.msra.mxu0 0.0
      %513 = vmatprep.subr.mxu0 0.0
      %514 = vmatpush1.msra.mxu0 0.0
      %515 = vmatprep.subr.mxu0 0.0
      %516 = vmatpush1.msra.mxu0 0.0
      %517 = vmatprep.subr.mxu0 0.0
      %518 = vmatpush1.msra.mxu0 0.0
      %519 = vmatprep.subr.mxu0 0.0
      %520 = vmatpush1.msra.mxu0 0.0
      %521 = vmatprep.subr.mxu0 0.0
      %522 = vmatpush1.msra.mxu0 0.0
      %523 = vmatprep.subr.mxu0 0.0
      %524 = vmatpush1.msra.mxu0 0.0
      %525 = vmatprep.subr.mxu0 0.0
      %526 = vmatpush1.msra.mxu0 0.0
      %527 = vmatprep.subr.mxu0 0.0
      %528 = vmatpush1.msra.mxu0 0.0
      %529 = vmatprep.mubr.f32.mxu0 0.0
      %530 = vmatmul.mubr.f32.gmra.mrb[0].mxu0 %v432
      %v531 = vpop.f32.mrb[0].mxu0
      %v532 = vadd.f32 0.0, %v531
      %v533 = vpop.f32.mrb[0].mxu0
      %v534 = vadd.f32 0.0, %v533
      %535 = vdwg.mxu0
      %v536 = vmul.f32 %v532, 13.856406
      %v537 = vmul.f32 %v534, 13.856406
      %538 = vst [vmem:[%s124] sm:$0xff] %v536
      %539 = vst [vmem:[%s124 + $0x8] sm:$0xff] %v537
      %s540 = smul.u32 %s24, 2
      %s541 = sadd.s32 %s540, %s25
      %p542 = scmp.lt.s32.totalorder %s541, 1
      %s543 = scalar_select %p542, %s541, 1
      %s544 = smul.addr %s543, 2
      %s545 = smul.addr %s544, 8
      %s546 = scalar_lea.vmem %s3, %s545
      // Predicated region
      $region97: #{adaptive_embedding_forward.1} parent=23 // pred_check
        %p547 = pneg %p75
      $region98: #{adaptive_embedding_forward.1} parent=23 // pred_check_branch
        %549 = sbr.rel (%p547) target = $region100
      $region99: #{adaptive_embedding_forward.1} parent=23 // pred_region
        %s550 = smul.u32 %s24, 2
        %s551 = sadd.s32 %s550, %s25
      $region100: #{adaptive_embedding_forward.1} parent=23 // pred_fallthru
        _
    $region24: #{adaptive_embedding_forward.1} parent=5 // pred_fallthru
      _
    %p552 = scmp.le.s32.totalorder 2, %s15
    // Predicated region
    $region101: #{adaptive_embedding_forward.1} parent=5 // pred_check
      %p553 = pneg %p552
    $region102: #{adaptive_embedding_forward.1} parent=5 // pred_check_branch
      %555 = sbr.rel (%p553) target = $region104
    $region103: #{adaptive_embedding_forward.1} parent=5 // pred_region
      %s556 = ssub.s32 %s15, 2
      // Predicated region
      $region105: #{adaptive_embedding_forward.1} parent=103 // pred_check
        %p557 = pneg %p81
      $region106: #{adaptive_embedding_forward.1} parent=103 // pred_check_branch
        %559 = sbr.rel (%p557) target = $region108
      $region107: #{adaptive_embedding_forward.1} parent=103 // pred_region
        %s560 = smul.u32 %s26, 2
        %s561 = sadd.s32 %s560, %s27
        %p562 = scmp.lt.s32.totalorder %s561, 1
        %s563 = scalar_select %p562, %s561, 1
        %s564 = smul.addr %s563, 2
        %s565 = smul.addr %s564, 8
        %s566 = scalar_lea.vmem %s3, %s565
      $region108: #{adaptive_embedding_forward.1} parent=103 // pred_fallthru
        _
    $region104: #{adaptive_embedding_forward.1} parent=5 // pred_fallthru
      _
  $region6: #{adaptive_embedding_forward.1} parent=0 // loop_footer
    %s19 = sadd.s32 1, %s15
  $region7: #{adaptive_embedding_forward.1} parent=0 // loop_footer_branch
    %14 = sbr.rel target = $region3
  $region8: #{adaptive_embedding_forward.1} parent=0 // loop_exit
    _
  %567 = vsyncmov [#allocation3]
  %s568 = vpop.sfrf %567
  %p569 = scmp.eq.s32.totalorder %s568, 0
  %p570 = pneg %p569
  %572 = shalt.err (%p570)
  %s573 = scalar_lea.sflag [#allocation3], 1
  %574 = vsyncmov %s573
  %s575 = vpop.sfrf %574
  %p576 = scmp.eq.s32.totalorder %s575, 0
  %p577 = pneg %p576
  %579 = shalt.err (%p577)

</llo_original>
